<compile_context>
chip_gen: v5e
topology: v5e:2x2
jax: 0.10.0
libtpu: 0.0.40
codegen_flags: <defaults>
</compile_context>

<pallas_src>
import jax
import jax.numpy as jnp
from jax.experimental import pallas as pl
from jax.experimental.pallas import tpu as pltpu

_G = 128                              # batch elements per output row (lane width)
_TARGET_STEP_BYTES = 4 * 1024 * 1024  # ~4 MiB of input per grid step
_PALLAS_MIN_BYTES = 2 * 1024 * 1024   # below this, XLA's fused jnp.sum wins
_MAX_AGENTS_PALLAS = 64               # selector stays small; VDN n_agents is tiny


def _round_up(x: int, m: int) -> int:
    return ((x + m - 1) // m) * m


def _vdn_kernel(x_ref, sel_ref, o_ref):
    # x_ref:   (TR, 128*N) — each row holds 128 batch elements x N agents in
    #          the original row-major order (agents on consecutive lanes).
    # sel_ref: (128*N, 128) — 0/1 selector, sel[i, j] = (i // N == j).
    # o_ref:   (TR, 128)    — per-row group sums, lane+sublane dense.
    x = x_ref[...].astype(jnp.float32)
    acc = jnp.dot(x, sel_ref[...], preferred_element_type=jnp.float32)
    o_ref[...] = acc.astype(o_ref.dtype)


def _vdn_forward_pallas(q_local: jax.Array) -> jax.Array:
    """Pallas path: sum over dim=1 of a (B, N) array, returns (B,)."""
    B, N = q_local.shape
    dtype = q_local.dtype
    W = _G * N                                   # input lanes per row

    # Free contiguous view (no data movement for a row-major array).
    flat = q_local.reshape(-1)                   # (B*N,)
    L = B * N
    L_pad = _round_up(L, W)
    if L_pad != L:
        # Only when B % 128 != 0. Zeros land in output lanes sliced off below.
        flat = jnp.pad(flat, (0, L_pad - L))
    rows = L_pad // W
    x2d = flat.reshape(rows, W)                  # free reshape (row-major)

    # Row tile: big enough for multi-MiB steps, 8-aligned sublanes, and clamped
    # so the 1-D "parallel" grid keeps >=2 steps when possible (v7x megacore).
    row_bytes = W * dtype.itemsize
    tr = max(8, ((_TARGET_STEP_BYTES // row_bytes) // 8) * 8)
    if rows < 2 * tr:
        half = _round_up(pl.cdiv(rows, 2), 8)
        tr = half if half < rows else rows       # full extent is always legal
    grid = (pl.cdiv(rows, tr),)

    # Constant 0/1 selector folding N consecutive lanes (agents) -> 1 output
    # lane.  Passed as an input with a constant block index, so it is fetched
    # into VMEM once and stays resident across grid steps.
    lane = jnp.arange(W, dtype=jnp.int32)
    grp = jnp.arange(_G, dtype=jnp.int32)
    sel = (lane[:, None] // N == grp[None, :]).astype(jnp.float32)

    out2d = pl.pallas_call(
        _vdn_kernel,
        out_shape=jax.ShapeDtypeStruct((rows, _G), dtype),
        grid=grid,
        in_specs=[
            pl.BlockSpec((tr, W), lambda i: (i, 0)),
            pl.BlockSpec((W, _G), lambda i: (0, 0)),   # resident constant
        ],
        out_specs=pl.BlockSpec((tr, _G), lambda i: (i, 0)),
        compiler_params=pltpu.CompilerParams(
            dimension_semantics=("parallel",),          # independent batch tiles
        ),
    )(x2d, sel)

    # Trailing (padded / out-of-bounds) entries are discarded here.
    return out2d.reshape(-1)[:B]


def vdn_forward(q_local: jax.Array, *, force_pallas: bool = False) -> jax.Array:
    """Equivalent of VDN.forward: sum over dim=1. Returns shape (batch,)."""
    B, N = q_local.shape
    nbytes = B * N * q_local.dtype.itemsize
    if (force_pallas or nbytes >= _PALLAS_MIN_BYTES) and N <= _MAX_AGENTS_PALLAS:
        return _vdn_forward_pallas(q_local)
    # Tiny problem (or unusually many agents): let XLA fuse the reduction.
    return jnp.sum(q_local, axis=1)


if __name__ == "__main__":
    k1, k2, k3 = jax.random.split(jax.random.PRNGKey(0), 3)

    # Small shape consistent with the module (batch, n_agents); force the
    # Pallas path so the kernel itself is validated.
    batch, n_agents = 8, 4
    q1 = jax.random.normal(k1, (batch, n_agents), dtype=jnp.float32)
    out1 = jax.block_until_ready(vdn_forward(q1, force_pallas=True))
    ref1 = jnp.sum(q1, axis=1)
    assert out1.shape == (batch,)
    assert jnp.allclose(out1, ref1, atol=1e-5, rtol=1e-5)

    # Non-128-aligned batch: exercises the flat zero-pad + partial last block.
    q2 = jax.random.normal(k2, (1200, n_agents), dtype=jnp.float32)
    out2 = jax.block_until_ready(vdn_forward(q2, force_pallas=True))
    ref2 = jnp.sum(q2, axis=1)
    assert out2.shape == (1200,)
    assert jnp.allclose(out2, ref2, atol=1e-5, rtol=1e-5)

    # 128-aligned batch: pad-free view + 2-step "parallel" grid.
    q3 = jax.random.normal(k3, (2048, n_agents), dtype=jnp.float32)
    out3 = jax.block_until_ready(vdn_forward(q3, force_pallas=True))
    ref3 = jnp.sum(q3, axis=1)
    assert out3.shape == (2048,)
    assert jnp.allclose(out3, ref3, atol=1e-5, rtol=1e-5)

    print("KERNEL_OK")
</pallas_src>

<mosaic_0001>
module attributes {stable_mosaic.version = 11 : i64} {
  func.func @_vdn_kernel(%arg0: i32, %arg1: memref<1x512xf32, #tpu.memory_space<vmem>>, %arg2: memref<512x128xf32, #tpu.memory_space<vmem>>, %arg3: memref<1x128xf32, #tpu.memory_space<vmem>>) attributes {dimension_semantics = [#tpu.dimension_semantics<parallel>], iteration_bounds = array<i64: 1>, scalar_prefetch = 0 : i64, scratch_operands = 0 : i64, tpu.core_type = #tpu.core_type<tc>, window_params = [{transform_indices = @transform_0, window_bounds = array<i64: 1, 512>}, {pipeline_mode = #tpu.pipeline_mode<synchronous>, transform_indices = @transform_1, window_bounds = array<i64: 512, 128>}, {transform_indices = @transform_2, window_bounds = array<i64: 1, 128>}]} {
    %c0 = arith.constant 0 : index
    %c0_0 = arith.constant 0 : index
    %0 = vector.load %arg1[%c0, %c0_0] : memref<1x512xf32, #tpu.memory_space<vmem>>, vector<1x512xf32>
    %c0_1 = arith.constant 0 : index
    %c0_2 = arith.constant 0 : index
    %1 = vector.load %arg2[%c0_1, %c0_2] : memref<512x128xf32, #tpu.memory_space<vmem>>, vector<512x128xf32>
    %cst = arith.constant dense<0.000000e+00> : vector<1x128xf32>
    %2 = tpu.matmul %0, %1, %cst {dimension_numbers = #tpu.dot_dimension_numbers<[1], [0], [0], [1], [0, 0, 1, 1], [], []>} : vector<1x512xf32>, vector<512x128xf32>, vector<1x128xf32> -> vector<1x128xf32>
    %c0_3 = arith.constant 0 : index
    %c0_4 = arith.constant 0 : index
    %3 = vector.load %arg3[%c0_3, %c0_4] : memref<1x128xf32, #tpu.memory_space<vmem>>, vector<1x128xf32>
    tpu.vector_store %arg3[%c0_3, %c0_4], %2 {strides = array<i32>} : memref<1x128xf32, #tpu.memory_space<vmem>>, vector<1x128xf32>,
    return
  }
  func.func @transform_0(%arg0: i32) -> (i32, i32) {
    %c0_i32 = arith.constant 0 : i32
    %c0_i32_0 = arith.constant 0 : i32
    return %arg0, %c0_i32 : i32, i32
  }
  func.func @transform_1(%arg0: i32) -> (i32, i32) {
    %c0_i32 = arith.constant 0 : i32
    %c0_i32_0 = arith.constant 0 : i32
    %c0_i32_1 = arith.constant 0 : i32
    return %c0_i32, %c0_i32_0 : i32, i32
  }
  func.func @transform_2(%arg0: i32) -> (i32, i32) {
    %c0_i32 = arith.constant 0 : i32
    %c0_i32_0 = arith.constant 0 : i32
    return %arg0, %c0_i32 : i32, i32
  }
}

</mosaic_0001>

<llo_original>
// kernel: tpu_custom_call.1
$region0: #{tpu_custom_call.1}
  #allocation0 [shape = 'u32[]', space=smem, size = 0x4, offset = 0x4, fixed_abs, tag = 'smem constant byte address 0x4 - core index']
  #allocation1 [shape = 'u32[72,128]{1,0:T(1,128)}', space=vmem, size = 0x9000, scoped, tag = 'internal scratch']
  %s0 = inlined_call_operand.hbm [shape: f32[1,512], index: 0, kind: input, shape index: {}]
  %s1 = inlined_call_operand.hbm [shape: f32[512,128], index: 1, kind: input, shape index: {}]
  %s2 = inlined_call_operand.hbm [shape: f32[1,128], index: 2, kind: output, shape index: {}]
  %s3 = sld [smem:[#allocation0]]
  $region26: #{tpu_custom_call.1} parent=0
    _
  %s5 = ssub.s32 1, %s3
  %s6 = scalar_select 0, %s5, %s3
  $region1: #{tpu_custom_call.1} parent=0
    #allocation2 [shape = 'u8[2048]{0}', space=vmem, size = 0x800, scoped, tag = 'input window, operand 0, single buffered']
    #allocation3 [shape = 's32[1]{0}', space=sflag, size = 0x4, scoped, tag = 'scoped memory for tpu_custom_call.1']
    #allocation4 [shape = 's32[1]{0}', space=sflag, size = 0x4, scoped, tag = 'scoped memory for tpu_custom_call.1']
    #allocation5 [shape = 'u8[262144]{0}', space=vmem, size = 0x40000, scoped, tag = 'input window, operand 1, single buffered']
    #allocation6 [shape = 's32[1]{0}', space=sflag, size = 0x4, scoped, tag = 'scoped memory for tpu_custom_call.1']
    #allocation7 [shape = 'u8[512]{0}', space=vmem, size = 0x400, scoped, tag = 'output window, operand 0, single buffered']
    %7 = vsyncpa [#allocation3], 0
    %8 = vsyncpa [#allocation6], 0
    %9 = vsyncpa [#allocation4], 0
    // Predicated region
    $region2: #{tpu_custom_call.1} parent=1 // pred_check
      _
    $region3: #{tpu_custom_call.1} parent=1 // pred_check_branch
      %11 = sbr.rel (0) target = $region5
    $region4: #{tpu_custom_call.1} parent=1 // pred_region
      %13 = vsyncadd [#allocation3], 0
      %s15 = sshll.u32 %s0, 4
      %s16 = int_to_ptr.hbm [resolvable:$true] %s15
      %s17 = sshll.u32 [#allocation2], 4
      %s18 = int_to_ptr.vmem [resolvable:$true] %s17
      %20 = dma.hbm_to_vmem [thread:$0]  %s16, 64, %s18, [#allocation3]
    $region5: #{tpu_custom_call.1} parent=1 // pred_fallthru
      _
    // Predicated region
    $region6: #{tpu_custom_call.1} parent=1 // pred_check
      _
    $region7: #{tpu_custom_call.1} parent=1 // pred_check_branch
      %22 = sbr.rel (0) target = $region9
    $region8: #{tpu_custom_call.1} parent=1 // pred_region
      %24 = vsyncadd [#allocation6], 0
      %s25 = sshll.u32 %s1, 4
      %s26 = int_to_ptr.hbm [resolvable:$true] %s25
      %s27 = sshll.u32 [#allocation5], 4
      %s28 = int_to_ptr.vmem [resolvable:$true] %s27
      %33 = dma.hbm_to_vmem [thread:$0]  %s26, 8192, %s28, [#allocation6], 128, 128, 8
    $region9: #{tpu_custom_call.1} parent=1 // pred_fallthru
      _
    // Predicated region
    $region10: #{tpu_custom_call.1} parent=1 // pred_check
      _
    $region11: #{tpu_custom_call.1} parent=1 // pred_check_branch
      %35 = sbr.rel (0) target = $region13
    $region12: #{tpu_custom_call.1} parent=1 // pred_region
      %37 = dma.done [#allocation3], 64
    $region13: #{tpu_custom_call.1} parent=1 // pred_fallthru
      _
    // Predicated region
    $region14: #{tpu_custom_call.1} parent=1 // pred_check
      _
    $region15: #{tpu_custom_call.1} parent=1 // pred_check_branch
      %39 = sbr.rel (0) target = $region17
    $region16: #{tpu_custom_call.1} parent=1 // pred_region
      %41 = dma.done [#allocation6], 8192
    $region17: #{tpu_custom_call.1} parent=1 // pred_fallthru
      _
    %v42 = vld [vmem:[#allocation2] sm:$0xf]
    %v43 = vld [vmem:[#allocation5] sm:$0xff]
    %v44 = vld [vmem:[#allocation5 + $0x8] sm:$0xff]
    %v45 = vld [vmem:[#allocation5 + $0x10] sm:$0xff]
    %v46 = vld [vmem:[#allocation5 + $0x18] sm:$0xff]
    %v47 = vld [vmem:[#allocation5 + $0x20] sm:$0xff]
    %v48 = vld [vmem:[#allocation5 + $0x28] sm:$0xff]
    %v49 = vld [vmem:[#allocation5 + $0x30] sm:$0xff]
    %v50 = vld [vmem:[#allocation5 + $0x38] sm:$0xff]
    %v51 = vld [vmem:[#allocation5 + $0x40] sm:$0xff]
    %v52 = vld [vmem:[#allocation5 + $0x48] sm:$0xff]
    %v53 = vld [vmem:[#allocation5 + $0x50] sm:$0xff]
    %v54 = vld [vmem:[#allocation5 + $0x58] sm:$0xff]
    %v55 = vld [vmem:[#allocation5 + $0x60] sm:$0xff]
    %v56 = vld [vmem:[#allocation5 + $0x68] sm:$0xff]
    %v57 = vld [vmem:[#allocation5 + $0x70] sm:$0xff]
    %v58 = vld [vmem:[#allocation5 + $0x78] sm:$0xff]
    %v59 = vld [vmem:[#allocation5 + $0x80] sm:$0xff]
    %v60 = vld [vmem:[#allocation5 + $0x88] sm:$0xff]
    %v61 = vld [vmem:[#allocation5 + $0x90] sm:$0xff]
    %v62 = vld [vmem:[#allocation5 + $0x98] sm:$0xff]
    %v63 = vld [vmem:[#allocation5 + $0xa0] sm:$0xff]
    %v64 = vld [vmem:[#allocation5 + $0xa8] sm:$0xff]
    %v65 = vld [vmem:[#allocation5 + $0xb0] sm:$0xff]
    %v66 = vld [vmem:[#allocation5 + $0xb8] sm:$0xff]
    %v67 = vld [vmem:[#allocation5 + $0xc0] sm:$0xff]
    %v68 = vld [vmem:[#allocation5 + $0xc8] sm:$0xff]
    %v69 = vld [vmem:[#allocation5 + $0xd0] sm:$0xff]
    %v70 = vld [vmem:[#allocation5 + $0xd8] sm:$0xff]
    %v71 = vld [vmem:[#allocation5 + $0xe0] sm:$0xff]
    %v72 = vld [vmem:[#allocation5 + $0xe8] sm:$0xff]
    %v73 = vld [vmem:[#allocation5 + $0xf0] sm:$0xff]
    %v74 = vld [vmem:[#allocation5 + $0xf8] sm:$0xff]
    %v75 = vld [vmem:[#allocation5 + $0x100] sm:$0xff]
    %v76 = vld [vmem:[#allocation5 + $0x108] sm:$0xff]
    %v77 = vld [vmem:[#allocation5 + $0x110] sm:$0xff]
    %v78 = vld [vmem:[#allocation5 + $0x118] sm:$0xff]
    %v79 = vld [vmem:[#allocation5 + $0x120] sm:$0xff]
    %v80 = vld [vmem:[#allocation5 + $0x128] sm:$0xff]
    %v81 = vld [vmem:[#allocation5 + $0x130] sm:$0xff]
    %v82 = vld [vmem:[#allocation5 + $0x138] sm:$0xff]
    %v83 = vld [vmem:[#allocation5 + $0x140] sm:$0xff]
    %v84 = vld [vmem:[#allocation5 + $0x148] sm:$0xff]
    %v85 = vld [vmem:[#allocation5 + $0x150] sm:$0xff]
    %v86 = vld [vmem:[#allocation5 + $0x158] sm:$0xff]
    %v87 = vld [vmem:[#allocation5 + $0x160] sm:$0xff]
    %v88 = vld [vmem:[#allocation5 + $0x168] sm:$0xff]
    %v89 = vld [vmem:[#allocation5 + $0x170] sm:$0xff]
    %v90 = vld [vmem:[#allocation5 + $0x178] sm:$0xff]
    %v91 = vld [vmem:[#allocation5 + $0x180] sm:$0xff]
    %v92 = vld [vmem:[#allocation5 + $0x188] sm:$0xff]
    %v93 = vld [vmem:[#allocation5 + $0x190] sm:$0xff]
    %v94 = vld [vmem:[#allocation5 + $0x198] sm:$0xff]
    %v95 = vld [vmem:[#allocation5 + $0x1a0] sm:$0xff]
    %v96 = vld [vmem:[#allocation5 + $0x1a8] sm:$0xff]
    %v97 = vld [vmem:[#allocation5 + $0x1b0] sm:$0xff]
    %v98 = vld [vmem:[#allocation5 + $0x1b8] sm:$0xff]
    %v99 = vld [vmem:[#allocation5 + $0x1c0] sm:$0xff]
    %v100 = vld [vmem:[#allocation5 + $0x1c8] sm:$0xff]
    %v101 = vld [vmem:[#allocation5 + $0x1d0] sm:$0xff]
    %v102 = vld [vmem:[#allocation5 + $0x1d8] sm:$0xff]
    %v103 = vld [vmem:[#allocation5 + $0x1e0] sm:$0xff]
    %v104 = vld [vmem:[#allocation5 + $0x1e8] sm:$0xff]
    %v105 = vld [vmem:[#allocation5 + $0x1f0] sm:$0xff]
    %v106 = vld [vmem:[#allocation5 + $0x1f8] sm:$0xff]
    %v108 = vperm.slane %v42, 0
    %v109 = vperm.slane %v42, 1
    %v110 = vperm.slane %v42, 2
    %v111 = vperm.slane %v42, 3
    %116 = vmatpush.msra.mxu0 %v58
    %117 = vmatpush.msra.mxu0 %v57
    %118 = vmatpush.msra.mxu0 %v56
    %119 = vmatpush.msra.mxu0 %v55
    %120 = vmatpush.msra.mxu0 %v54
    %121 = vmatpush.msra.mxu0 %v53
    %122 = vmatpush.msra.mxu0 %v52
    %123 = vmatpush.msra.mxu0 %v51
    %124 = vmatpush.msra.mxu0 %v50
    %125 = vmatpush.msra.mxu0 %v49
    %126 = vmatpush.msra.mxu0 %v48
    %127 = vmatpush.msra.mxu0 %v47
    %128 = vmatpush.msra.mxu0 %v46
    %129 = vmatpush.msra.mxu0 %v45
    %130 = vmatpush.msra.mxu0 %v44
    %131 = vmatpush.msra.mxu0 %v43
    %132 = vmatmul.f32.gmra.mxu0 %v108
    %v133 = vpop.f32.mrf.mxu0
    %v134 = vadd.f32 0.0, %v133
    %135 = vdwg.mxu0
    %136 = vmatpush.msra.mxu0 %v74
    %137 = vmatpush.msra.mxu0 %v73
    %138 = vmatpush.msra.mxu0 %v72
    %139 = vmatpush.msra.mxu0 %v71
    %140 = vmatpush.msra.mxu0 %v70
    %141 = vmatpush.msra.mxu0 %v69
    %142 = vmatpush.msra.mxu0 %v68
    %143 = vmatpush.msra.mxu0 %v67
    %144 = vmatpush.msra.mxu0 %v66
    %145 = vmatpush.msra.mxu0 %v65
    %146 = vmatpush.msra.mxu0 %v64
    %147 = vmatpush.msra.mxu0 %v63
    %148 = vmatpush.msra.mxu0 %v62
    %149 = vmatpush.msra.mxu0 %v61
    %150 = vmatpush.msra.mxu0 %v60
    %151 = vmatpush.msra.mxu0 %v59
    %152 = vmatmul.f32.gmra.mxu0 %v109
    %v153 = vpop.f32.mrf.mxu0
    %v154 = vadd.f32 %v134, %v153
    %155 = vdwg.mxu0
    %156 = vmatpush.msra.mxu0 %v90
    %157 = vmatpush.msra.mxu0 %v89
    %158 = vmatpush.msra.mxu0 %v88
    %159 = vmatpush.msra.mxu0 %v87
    %160 = vmatpush.msra.mxu0 %v86
    %161 = vmatpush.msra.mxu0 %v85
    %162 = vmatpush.msra.mxu0 %v84
    %163 = vmatpush.msra.mxu0 %v83
    %164 = vmatpush.msra.mxu0 %v82
    %165 = vmatpush.msra.mxu0 %v81
    %166 = vmatpush.msra.mxu0 %v80
    %167 = vmatpush.msra.mxu0 %v79
    %168 = vmatpush.msra.mxu0 %v78
    %169 = vmatpush.msra.mxu0 %v77
    %170 = vmatpush.msra.mxu0 %v76
    %171 = vmatpush.msra.mxu0 %v75
    %172 = vmatmul.f32.gmra.mxu0 %v110
    %v173 = vpop.f32.mrf.mxu0
    %v174 = vadd.f32 %v154, %v173
    %175 = vdwg.mxu0
    %176 = vmatpush.msra.mxu0 %v106
    %177 = vmatpush.msra.mxu0 %v105
    %178 = vmatpush.msra.mxu0 %v104
    %179 = vmatpush.msra.mxu0 %v103
    %180 = vmatpush.msra.mxu0 %v102
    %181 = vmatpush.msra.mxu0 %v101
    %182 = vmatpush.msra.mxu0 %v100
    %183 = vmatpush.msra.mxu0 %v99
    %184 = vmatpush.msra.mxu0 %v98
    %185 = vmatpush.msra.mxu0 %v97
    %186 = vmatpush.msra.mxu0 %v96
    %187 = vmatpush.msra.mxu0 %v95
    %188 = vmatpush.msra.mxu0 %v94
    %189 = vmatpush.msra.mxu0 %v93
    %190 = vmatpush.msra.mxu0 %v92
    %191 = vmatpush.msra.mxu0 %v91
    %192 = vmatmul.f32.gmra.mxu0 %v111
    %v193 = vpop.f32.mrf.mxu0
    %v194 = vadd.f32 %v174, %v193
    %195 = vdwg.mxu0
    %196 = vst [vmem:[#allocation7] sm:$0x1] %v194
    // Predicated region
    $region18: #{tpu_custom_call.1} parent=1 // pred_check
      _
    $region19: #{tpu_custom_call.1} parent=1 // pred_check_branch
      %198 = sbr.rel (0) target = $region21
    $region20: #{tpu_custom_call.1} parent=1 // pred_region
      %200 = vsyncadd [#allocation4], 0
      %s202 = sshll.u32 [#allocation7], 4
      %s203 = int_to_ptr.vmem [resolvable:$true] %s202
      %s204 = sshll.u32 %s2, 4
      %s205 = int_to_ptr.hbm [resolvable:$true] %s204
      %207 = dma.vmem_to_hbm [thread:$0]  %s203, 16, %s205, [#allocation4]
    $region21: #{tpu_custom_call.1} parent=1 // pred_fallthru
      _
    // Predicated region
    $region22: #{tpu_custom_call.1} parent=1 // pred_check
      _
    $region23: #{tpu_custom_call.1} parent=1 // pred_check_branch
      %209 = sbr.rel (0) target = $region25
    $region24: #{tpu_custom_call.1} parent=1 // pred_region
      %211 = dma.done [#allocation4], 16
    $region25: #{tpu_custom_call.1} parent=1 // pred_fallthru
      _
    %212 = vsyncpa [#allocation3], 1
    %213 = vsyncpa [#allocation6], 1
    %214 = vsyncpa [#allocation4], 1

</llo_original>
